<compile_context>
chip_gen: v6e
topology: v6e:2x2x1
jax: 0.10.0
libtpu: 0.0.40
codegen_flags: <defaults>
</compile_context>

<pallas_src>
import math

import jax
import jax.numpy as jnp
from jax.experimental import pallas as pl
from jax.experimental.pallas import tpu as pltpu

LANE = 128  # TPU lane width; every feature axis is padded to a multiple of this.


def _round_up(x: int, m: int) -> int:
    return ((x + m - 1) // m) * m


# ---------------------------------------------------------------------------
# Kernel
# ---------------------------------------------------------------------------
def _make_mlp_kernel(layer_dims):
    """Fused MLP kernel for a fixed tuple of (n_in_true, n_out_true) pairs."""
    num_layers = len(layer_dims)
    inv_sqrt2 = 1.0 / math.sqrt(2.0)

    def kernel(*refs):
        # refs = (x_ref, [wt_l, aux_l] * num_layers, o_ref)
        x_ref = refs[0]
        o_ref = refs[-1]
        p = refs[1:-1]

        # Keep inter-layer activations in f32 regardless of I/O dtype.
        h = x_ref[...].astype(jnp.float32)  # (TILE_B, n_in_pad); padded lanes 0

        for l in range(num_layers):
            wt = p[2 * l][...]          # (n_in_pad, n_out_pad), pre-transposed
            aux = p[2 * l + 1][...]     # (4, n_out_pad) f32: b, gamma, beta, mask
            b = aux[0:1, :]
            gamma = aux[1:2, :]
            beta = aux[2:3, :]
            mask = aux[3:4, :]
            n_true = layer_dims[l][1]
            n_pad = wt.shape[-1]

            # Linear: operands in the weights' native dtype (bf16 hits the MXU
            # at full rate on v6e/v7x), accumulation in f32; bias added in f32.
            z = jnp.dot(h.astype(wt.dtype), wt,
                        preferred_element_type=jnp.float32) + b

            # Exact GELU (matches nn.GELU(approximate='none')).
            a = 0.5 * z * (1.0 + jax.lax.erf(z * inv_sqrt2))

            # LayerNorm over the TRUE feature width.  Padded lanes of `a` are
            # exactly 0 (zero wt cols, zero bias, GELU(0)=0), so a plain sum is
            # the correct mean; only the centered value needs the lane mask.
            inv_n = 1.0 / n_true
            mean = jnp.sum(a, axis=-1, keepdims=True) * inv_n
            c = a - mean
            if n_pad != n_true:
                c = c * mask            # zero padded lanes for the variance
            var = jnp.sum(c * c, axis=-1, keepdims=True) * inv_n  # biased var
            # gamma/beta are zero in padded lanes -> padded lanes stay 0 for
            # the next layer's input.  Dropout(0.2) is identity in eval mode.
            h = c * jax.lax.rsqrt(var + 1e-5) * gamma + beta

        # Single cast at the final store (no per-layer truncation).
        o_ref[...] = h.astype(o_ref.dtype)

    return kernel


# ---------------------------------------------------------------------------
# Parameter init / packing
# ---------------------------------------------------------------------------
def init_mlp_params(key, n_in, n_out, n_hidden):
    """Torch-shaped params: list of (w (n_out, n_in), b, gamma, beta)."""
    dims = list(zip([n_in] + n_hidden, n_hidden + [n_out]))
    params = []
    for (d_in, d_out) in dims:
        key, k_w, k_b = jax.random.split(key, 3)
        bound = 1.0 / math.sqrt(d_in)  # torch nn.Linear default init
        w = jax.random.uniform(k_w, (d_out, d_in), jnp.float32, -bound, bound)
        b = jax.random.uniform(k_b, (d_out,), jnp.float32, -bound, bound)
        gamma = jnp.ones((d_out,), jnp.float32)   # LayerNorm defaults
        beta = jnp.zeros((d_out,), jnp.float32)
        params.append((w, b, gamma, beta))
    return params


def pack_params(params, param_dtype=jnp.float32):
    """One-time transpose + zero-pad of all weights to lane-aligned shapes.

    Zero padding is LOAD-BEARING for correctness of the fused kernel:
      * zero-padded wt columns + zero-padded bias  -> padded lanes of z are 0,
      * GELU(0) = 0                                -> padded lanes of a are 0,
      * zero-padded gamma/beta                     -> padded lanes of the layer
        output are 0, i.e. the next layer's input padding stays clean.
    Only the matmul weight is cast to `param_dtype` (e.g. bf16 for the MXU);
    bias / gamma / beta / mask stay f32 so GELU+LayerNorm run in f32.
    """
    packed = []
    layer_dims = []
    for (w, b, gamma, beta) in params:
        n_out, n_in = w.shape
        n_in_p = _round_up(n_in, LANE)
        n_out_p = _round_up(n_out, LANE)
        wt = (jnp.zeros((n_in_p, n_out_p), jnp.float32)
              .at[:n_in, :n_out].set(w.T).astype(param_dtype))
        aux = jnp.zeros((4, n_out_p), jnp.float32)
        aux = aux.at[0, :n_out].set(b)        # bias
        aux = aux.at[1, :n_out].set(gamma)    # LN gamma
        aux = aux.at[2, :n_out].set(beta)     # LN beta
        aux = aux.at[3, :n_out].set(1.0)      # LN lane mask (1 = true lane)
        packed += [wt, aux]
        layer_dims.append((n_in, n_out))
    return packed, tuple(layer_dims)


# ---------------------------------------------------------------------------
# Forward
# ---------------------------------------------------------------------------
def make_mlp_forward(layer_dims, max_tile_b=512, min_grid_steps=2):
    kernel = _make_mlp_kernel(layer_dims)
    n_in_true = layer_dims[0][0]
    n_out_true = layer_dims[-1][1]
    n_in_p = _round_up(n_in_true, LANE)
    n_out_p = _round_up(n_out_true, LANE)

    def forward(x, packed):
        B = x.shape[0]
        itemsize = jnp.dtype(x.dtype).itemsize
        sub = 8 if itemsize == 4 else 16       # sublane packing (f32 / bf16)

        # Batch tile: as large as allowed, multiple of the sublane packing,
        # and ALWAYS at least `min_grid_steps` grid steps so the "parallel"
        # annotation can shard across v7x's two TensorCores.
        B_a = _round_up(B, sub)
        tb = min(max_tile_b, B_a)
        n_tiles = max(min_grid_steps, pl.cdiv(B_a, tb))
        B_p = n_tiles * tb

        # Zero-pad batch remainder rows and feature lanes once.
        xp = jnp.zeros((B_p, n_in_p), x.dtype).at[:B, :n_in_true].set(x)

        in_specs = [pl.BlockSpec((tb, n_in_p), lambda i: (i, 0))]
        for prm in packed:
            # Constant index_map: fetched once, resident across all grid steps.
            in_specs.append(pl.BlockSpec(prm.shape, lambda i: (0, 0)))

        # Explicit VMEM budget: params (x2 to cover the runtime's buffering)
        # + double-buffered input/output tiles + headroom.
        param_bytes = sum(int(p.size) * jnp.dtype(p.dtype).itemsize
                          for p in packed)
        io_bytes = 2 * tb * (n_in_p + n_out_p) * itemsize
        vmem_limit = int(min(100 * 2**20,
                             max(8 * 2**20,
                                 2 * param_bytes + io_bytes + (2 << 20))))

        out_p = pl.pallas_call(
            kernel,
            out_shape=jax.ShapeDtypeStruct((B_p, n_out_p), x.dtype),
            grid=(n_tiles,),
            in_specs=in_specs,
            out_specs=pl.BlockSpec((tb, n_out_p), lambda i: (i, 0)),
            compiler_params=pltpu.CompilerParams(
                dimension_semantics=("parallel",),   # megacore / v7x 2 TCs
                vmem_limit_bytes=vmem_limit),
        )(xp, *packed)

        return out_p[:B, :n_out_true]

    return jax.jit(forward)


# Pure-JAX reference (torch-equivalent math) for correctness checks.
def mlp_reference(x, params):
    h = x
    for (w, b, gamma, beta) in params:
        z = h @ w.T + b
        a = 0.5 * z * (1.0 + jax.lax.erf(z * (1.0 / math.sqrt(2.0))))
        mean = jnp.mean(a, axis=-1, keepdims=True)
        var = jnp.mean((a - mean) ** 2, axis=-1, keepdims=True)
        h = (a - mean) / jnp.sqrt(var + 1e-5) * gamma + beta
    return h


if __name__ == "__main__":
    key = jax.random.PRNGKey(0)

    # MLP(n_in=16, n_out=8, n_hidden=[32, 32]) in eval mode; batch=8.
    n_in, n_out, n_hidden = 16, 8, [32, 32]
    batch = 8

    key, k_x, k_p = jax.random.split(key, 3)
    x = jax.random.normal(k_x, (batch, n_in), jnp.float32)
    params = init_mlp_params(k_p, n_in, n_out, n_hidden)
    ref = mlp_reference(x, params)

    # --- f32 weights: matches the torch/f32 reference tightly -------------
    packed, layer_dims = pack_params(params, param_dtype=jnp.float32)
    forward = make_mlp_forward(layer_dims)

    out = forward(x, packed)
    jax.block_until_ready(out)

    assert out.shape == (batch, n_out), out.shape
    assert out.dtype == jnp.float32
    assert bool(jnp.all(jnp.isfinite(out)))
    assert bool(jnp.allclose(out, ref, rtol=1e-3, atol=1e-3)), (
        float(jnp.max(jnp.abs(out - ref))))

    # --- bf16 weights (MXU-native on v5e/v6e/v7x): looser tolerance --------
    packed_bf16, _ = pack_params(params, param_dtype=jnp.bfloat16)
    out_bf16 = forward(x, packed_bf16)
    jax.block_until_ready(out_bf16)
    assert out_bf16.shape == (batch, n_out)
    assert bool(jnp.all(jnp.isfinite(out_bf16)))
    assert float(jnp.max(jnp.abs(out_bf16 - ref))) < 0.25, (
        float(jnp.max(jnp.abs(out_bf16 - ref))))

    print("KERNEL_OK")
</pallas_src>

<mosaic_0001>
module attributes {stable_mosaic.version = 11 : i64} {
  func.func @kernel(%arg0: i32, %arg1: memref<8x128xf32, #tpu.memory_space<vmem>>, %arg2: memref<128x128xf32, #tpu.memory_space<vmem>>, %arg3: memref<4x128xf32, #tpu.memory_space<vmem>>, %arg4: memref<128x128xf32, #tpu.memory_space<vmem>>, %arg5: memref<4x128xf32, #tpu.memory_space<vmem>>, %arg6: memref<128x128xf32, #tpu.memory_space<vmem>>, %arg7: memref<4x128xf32, #tpu.memory_space<vmem>>, %arg8: memref<8x128xf32, #tpu.memory_space<vmem>>) attributes {dimension_semantics = [#tpu.dimension_semantics<parallel>], iteration_bounds = array<i64: 2>, scalar_prefetch = 0 : i64, scratch_operands = 0 : i64, tpu.core_type = #tpu.core_type<tc>, window_params = [{transform_indices = @transform_0, window_bounds = array<i64: 8, 128>}, {pipeline_mode = #tpu.pipeline_mode<synchronous>, transform_indices = @transform_1, window_bounds = array<i64: 128, 128>}, {pipeline_mode = #tpu.pipeline_mode<synchronous>, transform_indices = @transform_2, window_bounds = array<i64: 4, 128>}, {pipeline_mode = #tpu.pipeline_mode<synchronous>, transform_indices = @transform_3, window_bounds = array<i64: 128, 128>}, {pipeline_mode = #tpu.pipeline_mode<synchronous>, transform_indices = @transform_4, window_bounds = array<i64: 4, 128>}, {pipeline_mode = #tpu.pipeline_mode<synchronous>, transform_indices = @transform_5, window_bounds = array<i64: 128, 128>}, {pipeline_mode = #tpu.pipeline_mode<synchronous>, transform_indices = @transform_6, window_bounds = array<i64: 4, 128>}, {transform_indices = @transform_7, window_bounds = array<i64: 8, 128>}]} {
    %c0 = arith.constant 0 : index
    %c0_0 = arith.constant 0 : index
    %0 = vector.load %arg1[%c0, %c0_0] : memref<8x128xf32, #tpu.memory_space<vmem>>, vector<8x128xf32>
    %c0_1 = arith.constant 0 : index
    %c0_2 = arith.constant 0 : index
    %1 = vector.load %arg2[%c0_1, %c0_2] : memref<128x128xf32, #tpu.memory_space<vmem>>, vector<128x128xf32>
    %c0_3 = arith.constant 0 : index
    %c0_4 = arith.constant 0 : index
    %2 = vector.load %arg3[%c0_3, %c0_4] : memref<4x128xf32, #tpu.memory_space<vmem>>, vector<4x128xf32>
    %3 = vector.extract_strided_slice %2 {offsets = [0, 0], sizes = [1, 128], strides = [1, 1]} : vector<4x128xf32> to vector<1x128xf32>
    %4 = vector.extract_strided_slice %2 {offsets = [1, 0], sizes = [1, 128], strides = [1, 1]} : vector<4x128xf32> to vector<1x128xf32>
    %5 = vector.extract_strided_slice %2 {offsets = [2, 0], sizes = [1, 128], strides = [1, 1]} : vector<4x128xf32> to vector<1x128xf32>
    %6 = vector.extract_strided_slice %2 {offsets = [3, 0], sizes = [1, 128], strides = [1, 1]} : vector<4x128xf32> to vector<1x128xf32>
    %cst = arith.constant dense<0.000000e+00> : vector<8x128xf32>
    %7 = tpu.matmul %0, %1, %cst {dimension_numbers = #tpu.dot_dimension_numbers<[1], [0], [0], [1], [0, 0, 1, 1], [], []>} : vector<8x128xf32>, vector<128x128xf32>, vector<8x128xf32> -> vector<8x128xf32>
    %8 = vector.broadcast %3 : vector<1x128xf32> to vector<8x128xf32>
    %9 = arith.addf %7, %8 : vector<8x128xf32>
    %cst_5 = arith.constant 5.000000e-01 : f32
    %10 = vector.broadcast %cst_5 : f32 to vector<8x128xf32>
    %11 = arith.mulf %10, %9 : vector<8x128xf32>
    %cst_6 = arith.constant 0.707106769 : f32
    %12 = vector.broadcast %cst_6 : f32 to vector<8x128xf32>
    %13 = arith.mulf %9, %12 : vector<8x128xf32>
    %14 = math.erf %13 : vector<8x128xf32>
    %cst_7 = arith.constant 1.000000e+00 : f32
    %15 = vector.broadcast %cst_7 : f32 to vector<8x128xf32>
    %16 = arith.addf %15, %14 : vector<8x128xf32>
    %17 = arith.mulf %11, %16 : vector<8x128xf32>
    %cst_8 = arith.constant dense<0.000000e+00> : vector<8xf32>
    %18 = vector.multi_reduction <add>, %17, %cst_8 [1] : vector<8x128xf32> to vector<8xf32>
    %19 = vector.shape_cast %18 : vector<8xf32> to vector<8x1xf32>
    %cst_9 = arith.constant 3.125000e-02 : f32
    %20 = vector.broadcast %cst_9 : f32 to vector<8x1xf32>
    %21 = arith.mulf %19, %20 : vector<8x1xf32>
    %22 = vector.broadcast %21 : vector<8x1xf32> to vector<8x128xf32>
    %23 = arith.subf %17, %22 : vector<8x128xf32>
    %24 = vector.broadcast %6 : vector<1x128xf32> to vector<8x128xf32>
    %25 = arith.mulf %23, %24 : vector<8x128xf32>
    %26 = arith.mulf %25, %25 : vector<8x128xf32>
    %cst_10 = arith.constant dense<0.000000e+00> : vector<8xf32>
    %27 = vector.multi_reduction <add>, %26, %cst_10 [1] : vector<8x128xf32> to vector<8xf32>
    %28 = vector.shape_cast %27 : vector<8xf32> to vector<8x1xf32>
    %cst_11 = arith.constant 3.125000e-02 : f32
    %29 = vector.broadcast %cst_11 : f32 to vector<8x1xf32>
    %30 = arith.mulf %28, %29 : vector<8x1xf32>
    %cst_12 = arith.constant 9.99999974E-6 : f32
    %31 = vector.broadcast %cst_12 : f32 to vector<8x1xf32>
    %32 = arith.addf %30, %31 : vector<8x1xf32>
    %33 = math.rsqrt %32 : vector<8x1xf32>
    %34 = vector.broadcast %33 : vector<8x1xf32> to vector<8x128xf32>
    %35 = arith.mulf %25, %34 : vector<8x128xf32>
    %36 = vector.broadcast %4 : vector<1x128xf32> to vector<8x128xf32>
    %37 = arith.mulf %35, %36 : vector<8x128xf32>
    %38 = vector.broadcast %5 : vector<1x128xf32> to vector<8x128xf32>
    %39 = arith.addf %37, %38 : vector<8x128xf32>
    %c0_13 = arith.constant 0 : index
    %c0_14 = arith.constant 0 : index
    %40 = vector.load %arg4[%c0_13, %c0_14] : memref<128x128xf32, #tpu.memory_space<vmem>>, vector<128x128xf32>
    %c0_15 = arith.constant 0 : index
    %c0_16 = arith.constant 0 : index
    %41 = vector.load %arg5[%c0_15, %c0_16] : memref<4x128xf32, #tpu.memory_space<vmem>>, vector<4x128xf32>
    %42 = vector.extract_strided_slice %41 {offsets = [0, 0], sizes = [1, 128], strides = [1, 1]} : vector<4x128xf32> to vector<1x128xf32>
    %43 = vector.extract_strided_slice %41 {offsets = [1, 0], sizes = [1, 128], strides = [1, 1]} : vector<4x128xf32> to vector<1x128xf32>
    %44 = vector.extract_strided_slice %41 {offsets = [2, 0], sizes = [1, 128], strides = [1, 1]} : vector<4x128xf32> to vector<1x128xf32>
    %45 = vector.extract_strided_slice %41 {offsets = [3, 0], sizes = [1, 128], strides = [1, 1]} : vector<4x128xf32> to vector<1x128xf32>
    %cst_17 = arith.constant dense<0.000000e+00> : vector<8x128xf32>
    %46 = tpu.matmul %39, %40, %cst_17 {dimension_numbers = #tpu.dot_dimension_numbers<[1], [0], [0], [1], [0, 0, 1, 1], [], []>} : vector<8x128xf32>, vector<128x128xf32>, vector<8x128xf32> -> vector<8x128xf32>
    %47 = vector.broadcast %42 : vector<1x128xf32> to vector<8x128xf32>
    %48 = arith.addf %46, %47 : vector<8x128xf32>
    %cst_18 = arith.constant 5.000000e-01 : f32
    %49 = vector.broadcast %cst_18 : f32 to vector<8x128xf32>
    %50 = arith.mulf %49, %48 : vector<8x128xf32>
    %cst_19 = arith.constant 0.707106769 : f32
    %51 = vector.broadcast %cst_19 : f32 to vector<8x128xf32>
    %52 = arith.mulf %48, %51 : vector<8x128xf32>
    %53 = math.erf %52 : vector<8x128xf32>
    %cst_20 = arith.constant 1.000000e+00 : f32
    %54 = vector.broadcast %cst_20 : f32 to vector<8x128xf32>
    %55 = arith.addf %54, %53 : vector<8x128xf32>
    %56 = arith.mulf %50, %55 : vector<8x128xf32>
    %cst_21 = arith.constant dense<0.000000e+00> : vector<8xf32>
    %57 = vector.multi_reduction <add>, %56, %cst_21 [1] : vector<8x128xf32> to vector<8xf32>
    %58 = vector.shape_cast %57 : vector<8xf32> to vector<8x1xf32>
    %cst_22 = arith.constant 3.125000e-02 : f32
    %59 = vector.broadcast %cst_22 : f32 to vector<8x1xf32>
    %60 = arith.mulf %58, %59 : vector<8x1xf32>
    %61 = vector.broadcast %60 : vector<8x1xf32> to vector<8x128xf32>
    %62 = arith.subf %56, %61 : vector<8x128xf32>
    %63 = vector.broadcast %45 : vector<1x128xf32> to vector<8x128xf32>
    %64 = arith.mulf %62, %63 : vector<8x128xf32>
    %65 = arith.mulf %64, %64 : vector<8x128xf32>
    %cst_23 = arith.constant dense<0.000000e+00> : vector<8xf32>
    %66 = vector.multi_reduction <add>, %65, %cst_23 [1] : vector<8x128xf32> to vector<8xf32>
    %67 = vector.shape_cast %66 : vector<8xf32> to vector<8x1xf32>
    %cst_24 = arith.constant 3.125000e-02 : f32
    %68 = vector.broadcast %cst_24 : f32 to vector<8x1xf32>
    %69 = arith.mulf %67, %68 : vector<8x1xf32>
    %cst_25 = arith.constant 9.99999974E-6 : f32
    %70 = vector.broadcast %cst_25 : f32 to vector<8x1xf32>
    %71 = arith.addf %69, %70 : vector<8x1xf32>
    %72 = math.rsqrt %71 : vector<8x1xf32>
    %73 = vector.broadcast %72 : vector<8x1xf32> to vector<8x128xf32>
    %74 = arith.mulf %64, %73 : vector<8x128xf32>
    %75 = vector.broadcast %43 : vector<1x128xf32> to vector<8x128xf32>
    %76 = arith.mulf %74, %75 : vector<8x128xf32>
    %77 = vector.broadcast %44 : vector<1x128xf32> to vector<8x128xf32>
    %78 = arith.addf %76, %77 : vector<8x128xf32>
    %c0_26 = arith.constant 0 : index
    %c0_27 = arith.constant 0 : index
    %79 = vector.load %arg6[%c0_26, %c0_27] : memref<128x128xf32, #tpu.memory_space<vmem>>, vector<128x128xf32>
    %c0_28 = arith.constant 0 : index
    %c0_29 = arith.constant 0 : index
    %80 = vector.load %arg7[%c0_28, %c0_29] : memref<4x128xf32, #tpu.memory_space<vmem>>, vector<4x128xf32>
    %81 = vector.extract_strided_slice %80 {offsets = [0, 0], sizes = [1, 128], strides = [1, 1]} : vector<4x128xf32> to vector<1x128xf32>
    %82 = vector.extract_strided_slice %80 {offsets = [1, 0], sizes = [1, 128], strides = [1, 1]} : vector<4x128xf32> to vector<1x128xf32>
    %83 = vector.extract_strided_slice %80 {offsets = [2, 0], sizes = [1, 128], strides = [1, 1]} : vector<4x128xf32> to vector<1x128xf32>
    %84 = vector.extract_strided_slice %80 {offsets = [3, 0], sizes = [1, 128], strides = [1, 1]} : vector<4x128xf32> to vector<1x128xf32>
    %cst_30 = arith.constant dense<0.000000e+00> : vector<8x128xf32>
    %85 = tpu.matmul %78, %79, %cst_30 {dimension_numbers = #tpu.dot_dimension_numbers<[1], [0], [0], [1], [0, 0, 1, 1], [], []>} : vector<8x128xf32>, vector<128x128xf32>, vector<8x128xf32> -> vector<8x128xf32>
    %86 = vector.broadcast %81 : vector<1x128xf32> to vector<8x128xf32>
    %87 = arith.addf %85, %86 : vector<8x128xf32>
    %cst_31 = arith.constant 5.000000e-01 : f32
    %88 = vector.broadcast %cst_31 : f32 to vector<8x128xf32>
    %89 = arith.mulf %88, %87 : vector<8x128xf32>
    %cst_32 = arith.constant 0.707106769 : f32
    %90 = vector.broadcast %cst_32 : f32 to vector<8x128xf32>
    %91 = arith.mulf %87, %90 : vector<8x128xf32>
    %92 = math.erf %91 : vector<8x128xf32>
    %cst_33 = arith.constant 1.000000e+00 : f32
    %93 = vector.broadcast %cst_33 : f32 to vector<8x128xf32>
    %94 = arith.addf %93, %92 : vector<8x128xf32>
    %95 = arith.mulf %89, %94 : vector<8x128xf32>
    %cst_34 = arith.constant dense<0.000000e+00> : vector<8xf32>
    %96 = vector.multi_reduction <add>, %95, %cst_34 [1] : vector<8x128xf32> to vector<8xf32>
    %97 = vector.shape_cast %96 : vector<8xf32> to vector<8x1xf32>
    %cst_35 = arith.constant 1.250000e-01 : f32
    %98 = vector.broadcast %cst_35 : f32 to vector<8x1xf32>
    %99 = arith.mulf %97, %98 : vector<8x1xf32>
    %100 = vector.broadcast %99 : vector<8x1xf32> to vector<8x128xf32>
    %101 = arith.subf %95, %100 : vector<8x128xf32>
    %102 = vector.broadcast %84 : vector<1x128xf32> to vector<8x128xf32>
    %103 = arith.mulf %101, %102 : vector<8x128xf32>
    %104 = arith.mulf %103, %103 : vector<8x128xf32>
    %cst_36 = arith.constant dense<0.000000e+00> : vector<8xf32>
    %105 = vector.multi_reduction <add>, %104, %cst_36 [1] : vector<8x128xf32> to vector<8xf32>
    %106 = vector.shape_cast %105 : vector<8xf32> to vector<8x1xf32>
    %cst_37 = arith.constant 1.250000e-01 : f32
    %107 = vector.broadcast %cst_37 : f32 to vector<8x1xf32>
    %108 = arith.mulf %106, %107 : vector<8x1xf32>
    %cst_38 = arith.constant 9.99999974E-6 : f32
    %109 = vector.broadcast %cst_38 : f32 to vector<8x1xf32>
    %110 = arith.addf %108, %109 : vector<8x1xf32>
    %111 = math.rsqrt %110 : vector<8x1xf32>
    %112 = vector.broadcast %111 : vector<8x1xf32> to vector<8x128xf32>
    %113 = arith.mulf %103, %112 : vector<8x128xf32>
    %114 = vector.broadcast %82 : vector<1x128xf32> to vector<8x128xf32>
    %115 = arith.mulf %113, %114 : vector<8x128xf32>
    %116 = vector.broadcast %83 : vector<1x128xf32> to vector<8x128xf32>
    %117 = arith.addf %115, %116 : vector<8x128xf32>
    %c0_39 = arith.constant 0 : index
    %c0_40 = arith.constant 0 : index
    %118 = vector.load %arg8[%c0_39, %c0_40] : memref<8x128xf32, #tpu.memory_space<vmem>>, vector<8x128xf32>
    tpu.vector_store %arg8[%c0_39, %c0_40], %117 {strides = array<i32>} : memref<8x128xf32, #tpu.memory_space<vmem>>, vector<8x128xf32>,
    return
  }
  func.func @transform_0(%arg0: i32) -> (i32, i32) {
    %c0_i32 = arith.constant 0 : i32
    %c0_i32_0 = arith.constant 0 : i32
    return %arg0, %c0_i32 : i32, i32
  }
  func.func @transform_1(%arg0: i32) -> (i32, i32) {
    %c0_i32 = arith.constant 0 : i32
    %c0_i32_0 = arith.constant 0 : i32
    %c0_i32_1 = arith.constant 0 : i32
    return %c0_i32, %c0_i32_0 : i32, i32
  }
  func.func @transform_2(%arg0: i32) -> (i32, i32) {
    %c0_i32 = arith.constant 0 : i32
    %c0_i32_0 = arith.constant 0 : i32
    %c0_i32_1 = arith.constant 0 : i32
    return %c0_i32, %c0_i32_0 : i32, i32
  }
  func.func @transform_3(%arg0: i32) -> (i32, i32) {
    %c0_i32 = arith.constant 0 : i32
    %c0_i32_0 = arith.constant 0 : i32
    %c0_i32_1 = arith.constant 0 : i32
    return %c0_i32, %c0_i32_0 : i32, i32
  }
  func.func @transform_4(%arg0: i32) -> (i32, i32) {
    %c0_i32 = arith.constant 0 : i32
    %c0_i32_0 = arith.constant 0 : i32
    %c0_i32_1 = arith.constant 0 : i32
    return %c0_i32, %c0_i32_0 : i32, i32
  }
  func.func @transform_5(%arg0: i32) -> (i32, i32) {
    %c0_i32 = arith.constant 0 : i32
    %c0_i32_0 = arith.constant 0 : i32
    %c0_i32_1 = arith.constant 0 : i32
    return %c0_i32, %c0_i32_0 : i32, i32
  }
  func.func @transform_6(%arg0: i32) -> (i32, i32) {
    %c0_i32 = arith.constant 0 : i32
    %c0_i32_0 = arith.constant 0 : i32
    %c0_i32_1 = arith.constant 0 : i32
    return %c0_i32, %c0_i32_0 : i32, i32
  }
  func.func @transform_7(%arg0: i32) -> (i32, i32) {
    %c0_i32 = arith.constant 0 : i32
    %c0_i32_0 = arith.constant 0 : i32
    return %arg0, %c0_i32 : i32, i32
  }
}

</mosaic_0001>

<llo_original>
// kernel: forward.1
$region0: #{forward.1}
  #allocation0 [shape = 'u32[]', space=smem, size = 0x4, offset = 0x4, fixed_abs, tag = 'smem constant byte address 0x4 - core index']
  #allocation1 [shape = 'u32[144,128]{1,0:T(1,128)}', space=vmem, size = 0x12000, scoped, tag = 'internal scratch']
  %s0 = inlined_call_operand.vmem [shape: f32[16,128], index: 0, kind: input, shape index: {}]
  %s1 = inlined_call_operand.hbm [shape: f32[128,128], index: 1, kind: input, shape index: {}]
  %s2 = inlined_call_operand.vmem [shape: f32[4,128], index: 2, kind: input, shape index: {}]
  %s3 = inlined_call_operand.hbm [shape: f32[128,128], index: 3, kind: input, shape index: {}]
  %s4 = inlined_call_operand.vmem [shape: f32[4,128], index: 4, kind: input, shape index: {}]
  %s5 = inlined_call_operand.hbm [shape: f32[128,128], index: 5, kind: input, shape index: {}]
  %s6 = inlined_call_operand.vmem [shape: f32[4,128], index: 6, kind: input, shape index: {}]
  %s7 = inlined_call_operand.vmem [shape: f32[16,128], index: 7, kind: output, shape index: {}]
  %s8 = sld [smem:[#allocation0]]
  $region73: #{forward.1} parent=0
    _
  %s10 = ssub.s32 1, %s8
  %s11 = scalar_select 0, %s10, %s8
  $region1: #{forward.1} parent=0
    #allocation2 [shape = 'u8[65536]{0}', space=vmem, size = 0x10000, scoped, tag = 'input window, operand 1, single buffered']
    #allocation3 [shape = 's32[2]{0}', space=sflag, size = 0x8, scoped, tag = 'scoped memory for forward.1']
    #allocation4 [shape = 'u8[65536]{0}', space=vmem, size = 0x10000, scoped, tag = 'input window, operand 3, single buffered']
    #allocation5 [shape = 's32[1]{0}', space=sflag, size = 0x4, scoped, tag = 'scoped memory for forward.1']
    #allocation6 [shape = 'u8[65536]{0}', space=vmem, size = 0x10000, scoped, tag = 'input window, operand 5, single buffered']
    %12 = vsyncpa [#allocation3], 0
    %13 = vsyncpa [#allocation5], 0
    loop: start=0, step=1, limit=4
    $region2: #{forward.1} parent=1 // loop_pre_header
      _
    $region3: #{forward.1} parent=1 // loop_header
      %s15 = sphi 0, %s19
      %p16 = scmp.ge.s32.totalorder %s15, 4
      %s25 = sphi 0, %s27
      %s28 = sphi 0, %s25
      %s29 = sphi 0, %s28
      %s45 = sphi 0, %s29
      %s49 = sphi 0, %s49
      %s51 = sphi 0, %s49
      %s52 = sphi 0, %s51
      %s66 = sphi 0, %s52
      %s70 = sphi 0, %s70
      %s72 = sphi 0, %s70
      %s73 = sphi 0, %s72
      %s87 = sphi 0, %s73
      %s91 = sphi 0, %s91
      %s93 = sphi 0, %s91
      %s94 = sphi 0, %s93
      %s108 = sphi 0, %s94
      %s112 = sphi 0, %s112
      %s114 = sphi 0, %s112
      %s115 = sphi 0, %s114
      %s129 = sphi 0, %s115
      %s133 = sphi 0, %s133
      %s135 = sphi 0, %s133
      %s136 = sphi 0, %s135
      %s150 = sphi 0, %s136
      %s154 = sphi 0, %s154
      %s156 = sphi 0, %s154
      %s157 = sphi 0, %s156
      %s171 = sphi 0, %s157
      %s177 = sphi 0, %s179
      %s180 = sphi 0, %s177
      %s181 = sphi 0, %s180
      %s197 = sphi 0, %s181
    $region4: #{forward.1} parent=1 // loop_header_branch
      %18 = sbr.rel (%p16) target = $region8
    $region5: #{forward.1} parent=1 // loop_body
      %s20 = ssub.s32 %s15, 1
      %s21 = ssub.s32 %s15, 2
      %s22 = sadd.s32 %s15, 1
      %s23 = ssub.s32 %s15, %s22
      %p24 = scmp.eq.s32.totalorder %s23, 0
      %s26 = sadd.s32 %s25, 1
      %s27 = scalar_select %p24, %s25, %s26
      %p30 = pneg %p24
      %p31 = scmp.eq.s32.totalorder %s15, 1
      %p32 = por %p30, %p31
      %p33 = scmp.ne.s32.totalorder %s25, %s28
      %p34 = scmp.eq.s32.totalorder %s15, 0
      %p35 = por %p33, %p34
      %p36 = scmp.ne.s32.totalorder %s25, %s28
      %p37 = scmp.eq.s32.totalorder %s20, 1
      %p38 = por %p36, %p37
      %p39 = scmp.ne.s32.totalorder %s28, %s29
      %p40 = scmp.eq.s32.totalorder %s20, 0
      %p41 = por %p39, %p40
      %p42 = scmp.ne.s32.totalorder %s28, %s29
      %p43 = scmp.eq.s32.totalorder %s21, 1
      %p44 = por %p42, %p43
      %p46 = scmp.ne.s32.totalorder %s29, %s45
      %p47 = scmp.eq.s32.totalorder %s21, 0
      %p48 = por %p46, %p47
      %s50 = sadd.s32 %s49, 1
      %p53 = scmp.eq.s32.totalorder %s15, 1
      %p54 = scmp.ne.s32.totalorder %s49, %s51
      %p55 = scmp.eq.s32.totalorder %s15, 0
      %p56 = por %p54, %p55
      %p57 = scmp.ne.s32.totalorder %s49, %s51
      %p58 = scmp.eq.s32.totalorder %s20, 1
      %p59 = por %p57, %p58
      %p60 = scmp.ne.s32.totalorder %s51, %s52
      %p61 = scmp.eq.s32.totalorder %s20, 0
      %p62 = por %p60, %p61
      %p63 = scmp.ne.s32.totalorder %s51, %s52
      %p64 = scmp.eq.s32.totalorder %s21, 1
      %p65 = por %p63, %p64
      %p67 = scmp.ne.s32.totalorder %s52, %s66
      %p68 = scmp.eq.s32.totalorder %s21, 0
      %p69 = por %p67, %p68
      %s71 = sadd.s32 %s70, 1
      %p74 = scmp.eq.s32.totalorder %s15, 1
      %p75 = scmp.ne.s32.totalorder %s70, %s72
      %p76 = scmp.eq.s32.totalorder %s15, 0
      %p77 = por %p75, %p76
      %p78 = scmp.ne.s32.totalorder %s70, %s72
      %p79 = scmp.eq.s32.totalorder %s20, 1
      %p80 = por %p78, %p79
      %p81 = scmp.ne.s32.totalorder %s72, %s73
      %p82 = scmp.eq.s32.totalorder %s20, 0
      %p83 = por %p81, %p82
      %p84 = scmp.ne.s32.totalorder %s72, %s73
      %p85 = scmp.eq.s32.totalorder %s21, 1
      %p86 = por %p84, %p85
      %p88 = scmp.ne.s32.totalorder %s73, %s87
      %p89 = scmp.eq.s32.totalorder %s21, 0
      %p90 = por %p88, %p89
      %s92 = sadd.s32 %s91, 1
      %p95 = scmp.eq.s32.totalorder %s15, 1
      %p96 = scmp.ne.s32.totalorder %s91, %s93
      %p97 = scmp.eq.s32.totalorder %s15, 0
      %p98 = por %p96, %p97
      %p99 = scmp.ne.s32.totalorder %s91, %s93
      %p100 = scmp.eq.s32.totalorder %s20, 1
      %p101 = por %p99, %p100
      %p102 = scmp.ne.s32.totalorder %s93, %s94
      %p103 = scmp.eq.s32.totalorder %s20, 0
      %p104 = por %p102, %p103
      %p105 = scmp.ne.s32.totalorder %s93, %s94
      %p106 = scmp.eq.s32.totalorder %s21, 1
      %p107 = por %p105, %p106
      %p109 = scmp.ne.s32.totalorder %s94, %s108
      %p110 = scmp.eq.s32.totalorder %s21, 0
      %p111 = por %p109, %p110
      %s113 = sadd.s32 %s112, 1
      %p116 = scmp.eq.s32.totalorder %s15, 1
      %p117 = scmp.ne.s32.totalorder %s112, %s114
      %p118 = scmp.eq.s32.totalorder %s15, 0
      %p119 = por %p117, %p118
      %p120 = scmp.ne.s32.totalorder %s112, %s114
      %p121 = scmp.eq.s32.totalorder %s20, 1
      %p122 = por %p120, %p121
      %p123 = scmp.ne.s32.totalorder %s114, %s115
      %p124 = scmp.eq.s32.totalorder %s20, 0
      %p125 = por %p123, %p124
      %p126 = scmp.ne.s32.totalorder %s114, %s115
      %p127 = scmp.eq.s32.totalorder %s21, 1
      %p128 = por %p126, %p127
      %p130 = scmp.ne.s32.totalorder %s115, %s129
      %p131 = scmp.eq.s32.totalorder %s21, 0
      %p132 = por %p130, %p131
      %s134 = sadd.s32 %s133, 1
      %p137 = scmp.eq.s32.totalorder %s15, 1
      %p138 = scmp.ne.s32.totalorder %s133, %s135
      %p139 = scmp.eq.s32.totalorder %s15, 0
      %p140 = por %p138, %p139
      %p141 = scmp.ne.s32.totalorder %s133, %s135
      %p142 = scmp.eq.s32.totalorder %s20, 1
      %p143 = por %p141, %p142
      %p144 = scmp.ne.s32.totalorder %s135, %s136
      %p145 = scmp.eq.s32.totalorder %s20, 0
      %p146 = por %p144, %p145
      %p147 = scmp.ne.s32.totalorder %s135, %s136
      %p148 = scmp.eq.s32.totalorder %s21, 1
      %p149 = por %p147, %p148
      %p151 = scmp.ne.s32.totalorder %s136, %s150
      %p152 = scmp.eq.s32.totalorder %s21, 0
      %p153 = por %p151, %p152
      %s155 = sadd.s32 %s154, 1
      %p158 = scmp.eq.s32.totalorder %s15, 1
      %p159 = scmp.ne.s32.totalorder %s154, %s156
      %p160 = scmp.eq.s32.totalorder %s15, 0
      %p161 = por %p159, %p160
      %p162 = scmp.ne.s32.totalorder %s154, %s156
      %p163 = scmp.eq.s32.totalorder %s20, 1
      %p164 = por %p162, %p163
      %p165 = scmp.ne.s32.totalorder %s156, %s157
      %p166 = scmp.eq.s32.totalorder %s20, 0
      %p167 = por %p165, %p166
      %p168 = scmp.ne.s32.totalorder %s156, %s157
      %p169 = scmp.eq.s32.totalorder %s21, 1
      %p170 = por %p168, %p169
      %p172 = scmp.ne.s32.totalorder %s157, %s171
      %p173 = scmp.eq.s32.totalorder %s21, 0
      %p174 = por %p172, %p173
      %s175 = ssub.s32 %s15, %s22
      %p176 = scmp.eq.s32.totalorder %s175, 0
      %s178 = sadd.s32 %s177, 1
      %s179 = scalar_select %p176, %s177, %s178
      %p182 = pneg %p176
      %p183 = scmp.eq.s32.totalorder %s15, 1
      %p184 = por %p182, %p183
      %p185 = scmp.ne.s32.totalorder %s177, %s180
      %p186 = scmp.eq.s32.totalorder %s15, 0
      %p187 = por %p185, %p186
      %p188 = scmp.ne.s32.totalorder %s177, %s180
      %p189 = scmp.eq.s32.totalorder %s20, 1
      %p190 = por %p188, %p189
      %p191 = scmp.ne.s32.totalorder %s180, %s181
      %p192 = scmp.eq.s32.totalorder %s20, 0
      %p193 = por %p191, %p192
      %p194 = scmp.ne.s32.totalorder %s180, %s181
      %p195 = scmp.eq.s32.totalorder %s21, 1
      %p196 = por %p194, %p195
      %p198 = scmp.ne.s32.totalorder %s181, %s197
      %p199 = scmp.eq.s32.totalorder %s21, 0
      %p200 = por %p198, %p199
      %p201 = scmp.le.s32.totalorder 1, %s15
      %p202 = scmp.lt.s32.totalorder %s15, 3
      %p203 = pnand %p201, %p202
      %p204 = pneg %p203
      // Predicated region
      $region9: #{forward.1} parent=5 // pred_check
        _
      $region10: #{forward.1} parent=5 // pred_check_branch
        %206 = sbr.rel (%p203) target = $region12
      $region11: #{forward.1} parent=5 // pred_region
        %s207 = ssub.s32 %s15, 1
        // Predicated region
        $region13: #{forward.1} parent=11 // pred_check
          %p208 = pneg %p62
        $region14: #{forward.1} parent=11 // pred_check_branch
          %210 = sbr.rel (%p208) target = $region16
        $region15: #{forward.1} parent=11 // pred_region
          %s212 = ssub.s32 2048, 2048
          %213 = vsyncadd [#allocation3], %s212
          %s214 = sshll.u32 [#allocation2], 4
          %s215 = int_to_ptr.vmem [resolvable:$true] %s214
          %220 = dma.hbm_to_vmem [thread:$0]  %s1, 2048, %s215, [#allocation3], 128, 128, 8
        $region16: #{forward.1} parent=11 // pred_fallthru
          _
        // Predicated region
        $region17: #{forward.1} parent=11 // pred_check
          %p221 = pneg %p83
        $region18: #{forward.1} parent=11 // pred_check_branch
          %223 = sbr.rel (%p221) target = $region20
        $region19: #{forward.1} parent=11 // pred_region
          _
        $region20: #{forward.1} parent=11 // pred_fallthru
          _
        // Predicated region
        $region21: #{forward.1} parent=11 // pred_check
          %p224 = pneg %p104
        $region22: #{forward.1} parent=11 // pred_check_branch
          %226 = sbr.rel (%p224) target = $region24
        $region23: #{forward.1} parent=11 // pred_region
          %s228 = ssub.s32 2048, 2048
          %229 = vsyncadd [#allocation5], %s228
          %s230 = sshll.u32 [#allocation4], 4
          %s231 = int_to_ptr.vmem [resolvable:$true] %s230
          %236 = dma.hbm_to_vmem [thread:$0]  %s3, 2048, %s231, [#allocation5], 128, 128, 8
        $region24: #{forward.1} parent=11 // pred_fallthru
          _
        // Predicated region
        $region25: #{forward.1} parent=11 // pred_check
          %p237 = pneg %p125
        $region26: #{forward.1} parent=11 // pred_check_branch
          %239 = sbr.rel (%p237) target = $region28
        $region27: #{forward.1} parent=11 // pred_region
          _
        $region28: #{forward.1} parent=11 // pred_fallthru
          _
        // Predicated region
        $region29: #{forward.1} parent=11 // pred_check
          %p240 = pneg %p146
        $region30: #{forward.1} parent=11 // pred_check_branch
          %242 = sbr.rel (%p240) target = $region32
        $region31: #{forward.1} parent=11 // pred_region
          %s244 = ssub.s32 2048, 2048
          %245 = vsyncadd [#allocation5], %s244
          %s246 = sshll.u32 [#allocation6], 4
          %s247 = int_to_ptr.vmem [resolvable:$true] %s246
          %252 = dma.hbm_to_vmem [thread:$0]  %s5, 2048, %s247, [#allocation5], 128, 128, 8
        $region32: #{forward.1} parent=11 // pred_fallthru
          _
        // Predicated region
        $region33: #{forward.1} parent=11 // pred_check
          %p253 = pneg %p167
        $region34: #{forward.1} parent=11 // pred_check_branch
          %255 = sbr.rel (%p253) target = $region36
        $region35: #{forward.1} parent=11 // pred_region
          _
        $region36: #{forward.1} parent=11 // pred_fallthru
          _
      $region12: #{forward.1} parent=5 // pred_fallthru
        _
      %p256 = scmp.lt.s32.totalorder %s15, 2
      // Predicated region
      $region37: #{forward.1} parent=5 // pred_check
        %p257 = pneg %p256
      $region38: #{forward.1} parent=5 // pred_check_branch
        %259 = sbr.rel (%p257) target = $region40
      $region39: #{forward.1} parent=5 // pred_region
        // Predicated region
        $region41: #{forward.1} parent=39 // pred_check
          %p260 = pneg %p35
        $region42: #{forward.1} parent=39 // pred_check_branch
          %262 = sbr.rel (%p260) target = $region44
        $region43: #{forward.1} parent=39 // pred_region
          %p263 = scmp.lt.s32.totalorder %s15, 1
          %s264 = scalar_select %p263, %s15, 1
          %s265 = smul.addr %s264, 8
          %s266 = scalar_lea.vmem %s0, %s265
        $region44: #{forward.1} parent=39 // pred_fallthru
          _
      $region40: #{forward.1} parent=5 // pred_fallthru
        _
      %p267 = scmp.le.s32.totalorder 1, %s15
      %p268 = scmp.lt.s32.totalorder %s15, 3
      %p269 = pnand %p267, %p268
      %p270 = pneg %p269
      // Predicated region
      $region45: #{forward.1} parent=5 // pred_check
        _
      $region46: #{forward.1} parent=5 // pred_check_branch
        %272 = sbr.rel (%p269) target = $region48
      $region47: #{forward.1} parent=5 // pred_region
        %s273 = ssub.s32 %s15, 1
        // Predicated region
        $region49: #{forward.1} parent=47 // pred_check
          %p274 = pneg %p62
        $region50: #{forward.1} parent=47 // pred_check_branch
          %276 = sbr.rel (%p274) target = $region52
        $region51: #{forward.1} parent=47 // pred_region
          %277 = dma.done [#allocation3], 2048
        $region52: #{forward.1} parent=47 // pred_fallthru
          _
        // Predicated region
        $region53: #{forward.1} parent=47 // pred_check
          %p278 = pneg %p104
        $region54: #{forward.1} parent=47 // pred_check_branch
          %280 = sbr.rel (%p278) target = $region56
        $region55: #{forward.1} parent=47 // pred_region
          %281 = dma.done [#allocation5], 2048
        $region56: #{forward.1} parent=47 // pred_fallthru
          _
        // Predicated region
        $region57: #{forward.1} parent=47 // pred_check
          %p282 = pneg %p146
        $region58: #{forward.1} parent=47 // pred_check_branch
          %284 = sbr.rel (%p282) target = $region60
        $region59: #{forward.1} parent=47 // pred_region
          %285 = dma.done [#allocation5], 2048
        $region60: #{forward.1} parent=47 // pred_fallthru
          _
        %p286 = scmp.lt.s32.totalorder %s20, 1
        %s287 = scalar_select %p286, %s20, 1
        %s288 = smul.addr %s287, 8
        %s289 = scalar_lea.vmem %s0, %s288
        %p290 = pneg %p41
        %p291 = pneg %p38
        %p292 = pneg %p62
        %p293 = pneg %p59
        %p294 = pneg %p83
        %p295 = pneg %p80
        %p296 = pneg %p104
        %p297 = pneg %p101
        %p298 = pneg %p125
        %p299 = pneg %p122
        %p300 = pneg %p146
        %p301 = pneg %p143
        %p302 = pneg %p167
        %p303 = pneg %p164
        %p304 = pneg %p193
        %p305 = pneg %p190
        %p306 = scmp.lt.s32.totalorder %s20, 1
        %s307 = scalar_select %p306, %s20, 1
        %s308 = smul.addr %s307, 8
        %s309 = scalar_lea.vmem %s7, %s308
        %p310 = scmp.lt.s32.totalorder %s20, 1
        %s311 = scalar_select %p310, %s20, 1
        %s312 = smul.addr %s311, 8
        %s313 = scalar_lea.vmem %s0, %s312
        %p314 = scmp.lt.s32.totalorder %s20, 1
        %s315 = scalar_select %p314, %s20, 1
        %s316 = smul.addr %s315, 8
        %s317 = scalar_lea.vmem %s7, %s316
        %v318 = vld [vmem:[%s313] sm:$0xff]
        %v319 = vld [vmem:[#allocation2] sm:$0xff]
        %v320 = vld [vmem:[#allocation2 + $0x8] sm:$0xff]
        %v321 = vld [vmem:[#allocation2 + $0x10] sm:$0xff]
        %v322 = vld [vmem:[#allocation2 + $0x18] sm:$0xff]
        %v323 = vld [vmem:[#allocation2 + $0x20] sm:$0xff]
        %v324 = vld [vmem:[#allocation2 + $0x28] sm:$0xff]
        %v325 = vld [vmem:[#allocation2 + $0x30] sm:$0xff]
        %v326 = vld [vmem:[#allocation2 + $0x38] sm:$0xff]
        %v327 = vld [vmem:[#allocation2 + $0x40] sm:$0xff]
        %v328 = vld [vmem:[#allocation2 + $0x48] sm:$0xff]
        %v329 = vld [vmem:[#allocation2 + $0x50] sm:$0xff]
        %v330 = vld [vmem:[#allocation2 + $0x58] sm:$0xff]
        %v331 = vld [vmem:[#allocation2 + $0x60] sm:$0xff]
        %v332 = vld [vmem:[#allocation2 + $0x68] sm:$0xff]
        %v333 = vld [vmem:[#allocation2 + $0x70] sm:$0xff]
        %v334 = vld [vmem:[#allocation2 + $0x78] sm:$0xff]
        %v335 = vld [vmem:[%s2] sm:$0xf]
        %v336 = vlaneseq
        %v337 = vshrl.u32 %v336, 7
        %v338 = vsub.s32 0, %v337
        %v339 = vrot.slane %v335, %v338
        %340 = vmatprep.subr.mxu0 0.0
        %341 = vmatpush1.msra.mxu0 %v334
        %342 = vmatprep.subr.mxu0 0.0
        %343 = vmatpush1.msra.mxu0 %v333
        %344 = vmatprep.subr.mxu0 0.0
        %345 = vmatpush1.msra.mxu0 %v332
        %346 = vmatprep.subr.mxu0 0.0
        %347 = vmatpush1.msra.mxu0 %v331
        %348 = vmatprep.subr.mxu0 0.0
        %349 = vmatpush1.msra.mxu0 %v330
        %350 = vmatprep.subr.mxu0 0.0
        %351 = vmatpush1.msra.mxu0 %v329
        %352 = vmatprep.subr.mxu0 0.0
        %353 = vmatpush1.msra.mxu0 %v328
        %354 = vmatprep.subr.mxu0 0.0
        %355 = vmatpush1.msra.mxu0 %v327
        %356 = vmatprep.subr.mxu0 0.0
        %357 = vmatpush1.msra.mxu0 %v326
        %358 = vmatprep.subr.mxu0 0.0
        %359 = vmatpush1.msra.mxu0 %v325
        %360 = vmatprep.subr.mxu0 0.0
        %361 = vmatpush1.msra.mxu0 %v324
        %362 = vmatprep.subr.mxu0 0.0
        %363 = vmatpush1.msra.mxu0 %v323
        %364 = vmatprep.subr.mxu0 0.0
        %365 = vmatpush1.msra.mxu0 %v322
        %366 = vmatprep.subr.mxu0 0.0
        %367 = vmatpush1.msra.mxu0 %v321
        %368 = vmatprep.subr.mxu0 0.0
        %369 = vmatpush1.msra.mxu0 %v320
        %370 = vmatprep.subr.mxu0 0.0
        %371 = vmatpush1.msra.mxu0 %v319
        %372 = vmatprep.subr.mxu0 0.0
        %373 = vmatpush2.msra.mxu0 0.0
        %374 = vmatprep.subr.mxu0 0.0
        %375 = vmatpush2.msra.mxu0 0.0
        %376 = vmatprep.subr.mxu0 0.0
        %377 = vmatpush2.msra.mxu0 0.0
        %378 = vmatprep.subr.mxu0 0.0
        %379 = vmatpush2.msra.mxu0 0.0
        %380 = vmatprep.subr.mxu0 0.0
        %381 = vmatpush2.msra.mxu0 0.0
        %382 = vmatprep.subr.mxu0 0.0
        %383 = vmatpush2.msra.mxu0 0.0
        %384 = vmatprep.subr.mxu0 0.0
        %385 = vmatpush2.msra.mxu0 0.0
        %386 = vmatprep.subr.mxu0 0.0
        %387 = vmatpush2.msra.mxu0 0.0
        %388 = vmatprep.subr.mxu0 0.0
        %389 = vmatpush2.msra.mxu0 0.0
        %390 = vmatprep.subr.mxu0 0.0
        %391 = vmatpush2.msra.mxu0 0.0
        %392 = vmatprep.subr.mxu0 0.0
        %393 = vmatpush2.msra.mxu0 0.0
        %394 = vmatprep.subr.mxu0 0.0
        %395 = vmatpush2.msra.mxu0 0.0
        %396 = vmatprep.subr.mxu0 0.0
        %397 = vmatpush2.msra.mxu0 0.0
        %398 = vmatprep.subr.mxu0 0.0
        %399 = vmatpush2.msra.mxu0 0.0
        %400 = vmatprep.subr.mxu0 0.0
        %401 = vmatpush2.msra.mxu0 0.0
        %402 = vmatprep.subr.mxu0 0.0
        %403 = vmatpush2.msra.mxu0 0.0
        %404 = vmatprep.mubr.f32.mxu0 0.0
        %405 = vmatmul.mubr.f32.gmra.mxu0 %v318
        %v406 = vpop.f32.mrf.mxu0
        %v407 = vadd.f32 %v339, %v406
        %v408 = vpop.f32.mrf.mxu0
        %409 = vdwg.mxu0
        %v410 = vmul.f32 %v407, 0.5
        %v411 = vmul.f32 %v407, 0.70710677
        %v412 = verf.f32.pop %v411
        %v413 = vadd.f32 %v412, 1.0
        %v414 = vmul.f32 %v410, %v413
        %415 = vadd.xlane.f32.xlu0 %v414
        %v416 = vpop.xlane.xlu0 %415
        %v417 = vmul.f32 %v416, 0.03125
        %v418 = vsub.f32 %v414, %v417
        %v419 = vlaneseq
        %v420 = vshrl.u32 %v419, 7
        %v421 = vsub.s32 3, %v420
        %v422 = vrot.slane %v335, %v421
        %v423 = vmul.f32 %v418, %v422
        %v424 = vmul.f32 %v423, %v423
        %425 = vadd.xlane.f32.xlu0 %v424
        %v426 = vpop.xlane.xlu0 %425
        %v427 = vmul.f32 %v426, 0.03125
        %v428 = vadd.f32 %v427, 1e-05
        %v429 = vrsqrt.pop %v428
        %v430 = vmul.f32 %v423, %v429
        %v431 = vlaneseq
        %v432 = vshrl.u32 %v431, 7
        %v433 = vsub.s32 1, %v432
        %v434 = vrot.slane %v335, %v433
        %v435 = vmul.f32 %v430, %v434
        %v436 = vlaneseq
        %v437 = vshrl.u32 %v436, 7
        %v438 = vsub.s32 2, %v437
        %v439 = vrot.slane %v335, %v438
        %v440 = vadd.f32 %v435, %v439
        %v441 = vld [vmem:[#allocation4] sm:$0xff]
        %v442 = vld [vmem:[#allocation4 + $0x8] sm:$0xff]
        %v443 = vld [vmem:[#allocation4 + $0x10] sm:$0xff]
        %v444 = vld [vmem:[#allocation4 + $0x18] sm:$0xff]
        %v445 = vld [vmem:[#allocation4 + $0x20] sm:$0xff]
        %v446 = vld [vmem:[#allocation4 + $0x28] sm:$0xff]
        %v447 = vld [vmem:[#allocation4 + $0x30] sm:$0xff]
        %v448 = vld [vmem:[#allocation4 + $0x38] sm:$0xff]
        %v449 = vld [vmem:[#allocation4 + $0x40] sm:$0xff]
        %v450 = vld [vmem:[#allocation4 + $0x48] sm:$0xff]
        %v451 = vld [vmem:[#allocation4 + $0x50] sm:$0xff]
        %v452 = vld [vmem:[#allocation4 + $0x58] sm:$0xff]
        %v453 = vld [vmem:[#allocation4 + $0x60] sm:$0xff]
        %v454 = vld [vmem:[#allocation4 + $0x68] sm:$0xff]
        %v455 = vld [vmem:[#allocation4 + $0x70] sm:$0xff]
        %v456 = vld [vmem:[#allocation4 + $0x78] sm:$0xff]
        %v457 = vld [vmem:[%s4] sm:$0xf]
        %v458 = vlaneseq
        %v459 = vshrl.u32 %v458, 7
        %v460 = vsub.s32 0, %v459
        %v461 = vrot.slane %v457, %v460
        %462 = vmatprep.subr.mxu0 0.0
        %463 = vmatpush1.msra.mxu0 %v456
        %464 = vmatprep.subr.mxu0 0.0
        %465 = vmatpush1.msra.mxu0 %v455
        %466 = vmatprep.subr.mxu0 0.0
        %467 = vmatpush1.msra.mxu0 %v454
        %468 = vmatprep.subr.mxu0 0.0
        %469 = vmatpush1.msra.mxu0 %v453
        %470 = vmatprep.subr.mxu0 0.0
        %471 = vmatpush1.msra.mxu0 %v452
        %472 = vmatprep.subr.mxu0 0.0
        %473 = vmatpush1.msra.mxu0 %v451
        %474 = vmatprep.subr.mxu0 0.0
        %475 = vmatpush1.msra.mxu0 %v450
        %476 = vmatprep.subr.mxu0 0.0
        %477 = vmatpush1.msra.mxu0 %v449
        %478 = vmatprep.subr.mxu0 0.0
        %479 = vmatpush1.msra.mxu0 %v448
        %480 = vmatprep.subr.mxu0 0.0
        %481 = vmatpush1.msra.mxu0 %v447
        %482 = vmatprep.subr.mxu0 0.0
        %483 = vmatpush1.msra.mxu0 %v446
        %484 = vmatprep.subr.mxu0 0.0
        %485 = vmatpush1.msra.mxu0 %v445
        %486 = vmatprep.subr.mxu0 0.0
        %487 = vmatpush1.msra.mxu0 %v444
        %488 = vmatprep.subr.mxu0 0.0
        %489 = vmatpush1.msra.mxu0 %v443
        %490 = vmatprep.subr.mxu0 0.0
        %491 = vmatpush1.msra.mxu0 %v442
        %492 = vmatprep.subr.mxu0 0.0
        %493 = vmatpush1.msra.mxu0 %v441
        %494 = vmatprep.subr.mxu0 0.0
        %495 = vmatpush2.msra.mxu0 0.0
        %496 = vmatprep.subr.mxu0 0.0
        %497 = vmatpush2.msra.mxu0 0.0
        %498 = vmatprep.subr.mxu0 0.0
        %499 = vmatpush2.msra.mxu0 0.0
        %500 = vmatprep.subr.mxu0 0.0
        %501 = vmatpush2.msra.mxu0 0.0
        %502 = vmatprep.subr.mxu0 0.0
        %503 = vmatpush2.msra.mxu0 0.0
        %504 = vmatprep.subr.mxu0 0.0
        %505 = vmatpush2.msra.mxu0 0.0
        %506 = vmatprep.subr.mxu0 0.0
        %507 = vmatpush2.msra.mxu0 0.0
        %508 = vmatprep.subr.mxu0 0.0
        %509 = vmatpush2.msra.mxu0 0.0
        %510 = vmatprep.subr.mxu0 0.0
        %511 = vmatpush2.msra.mxu0 0.0
        %512 = vmatprep.subr.mxu0 0.0
        %513 = vmatpush2.msra.mxu0 0.0
        %514 = vmatprep.subr.mxu0 0.0
        %515 = vmatpush2.msra.mxu0 0.0
        %516 = vmatprep.subr.mxu0 0.0
        %517 = vmatpush2.msra.mxu0 0.0
        %518 = vmatprep.subr.mxu0 0.0
        %519 = vmatpush2.msra.mxu0 0.0
        %520 = vmatprep.subr.mxu0 0.0
        %521 = vmatpush2.msra.mxu0 0.0
        %522 = vmatprep.subr.mxu0 0.0
        %523 = vmatpush2.msra.mxu0 0.0
        %524 = vmatprep.subr.mxu0 0.0
        %525 = vmatpush2.msra.mxu0 0.0
        %526 = vmatprep.mubr.f32.mxu0 0.0
        %527 = vmatmul.mubr.f32.gmra.mxu0 %v440
        %v528 = vpop.f32.mrf.mxu0
        %v529 = vadd.f32 %v461, %v528
        %v530 = vpop.f32.mrf.mxu0
        %531 = vdwg.mxu0
        %v532 = vmul.f32 %v529, 0.5
        %v533 = vmul.f32 %v529, 0.70710677
        %v534 = verf.f32.pop %v533
        %v535 = vadd.f32 %v534, 1.0
        %v536 = vmul.f32 %v532, %v535
        %537 = vadd.xlane.f32.xlu0 %v536
        %v538 = vpop.xlane.xlu0 %537
        %v539 = vmul.f32 %v538, 0.03125
        %v540 = vsub.f32 %v536, %v539
        %v541 = vlaneseq
        %v542 = vshrl.u32 %v541, 7
        %v543 = vsub.s32 3, %v542
        %v544 = vrot.slane %v457, %v543
        %v545 = vmul.f32 %v540, %v544
        %v546 = vmul.f32 %v545, %v545
        %547 = vadd.xlane.f32.xlu0 %v546
        %v548 = vpop.xlane.xlu0 %547
        %v549 = vmul.f32 %v548, 0.03125
        %v550 = vadd.f32 %v549, 1e-05
        %v551 = vrsqrt.pop %v550
        %v552 = vmul.f32 %v545, %v551
        %v553 = vlaneseq
        %v554 = vshrl.u32 %v553, 7
        %v555 = vsub.s32 1, %v554
        %v556 = vrot.slane %v457, %v555
        %v557 = vmul.f32 %v552, %v556
        %v558 = vlaneseq
        %v559 = vshrl.u32 %v558, 7
        %v560 = vsub.s32 2, %v559
        %v561 = vrot.slane %v457, %v560
        %v562 = vadd.f32 %v557, %v561
        %v563 = vld [vmem:[#allocation6] sm:$0xff]
        %v564 = vld [vmem:[#allocation6 + $0x8] sm:$0xff]
        %v565 = vld [vmem:[#allocation6 + $0x10] sm:$0xff]
        %v566 = vld [vmem:[#allocation6 + $0x18] sm:$0xff]
        %v567 = vld [vmem:[#allocation6 + $0x20] sm:$0xff]
        %v568 = vld [vmem:[#allocation6 + $0x28] sm:$0xff]
        %v569 = vld [vmem:[#allocation6 + $0x30] sm:$0xff]
        %v570 = vld [vmem:[#allocation6 + $0x38] sm:$0xff]
        %v571 = vld [vmem:[#allocation6 + $0x40] sm:$0xff]
        %v572 = vld [vmem:[#allocation6 + $0x48] sm:$0xff]
        %v573 = vld [vmem:[#allocation6 + $0x50] sm:$0xff]
        %v574 = vld [vmem:[#allocation6 + $0x58] sm:$0xff]
        %v575 = vld [vmem:[#allocation6 + $0x60] sm:$0xff]
        %v576 = vld [vmem:[#allocation6 + $0x68] sm:$0xff]
        %v577 = vld [vmem:[#allocation6 + $0x70] sm:$0xff]
        %v578 = vld [vmem:[#allocation6 + $0x78] sm:$0xff]
        %v579 = vld [vmem:[%s6] sm:$0xf]
        %v580 = vlaneseq
        %v581 = vshrl.u32 %v580, 7
        %v582 = vsub.s32 0, %v581
        %v583 = vrot.slane %v579, %v582
        %584 = vmatprep.subr.mxu0 0.0
        %585 = vmatpush1.msra.mxu0 %v578
        %586 = vmatprep.subr.mxu0 0.0
        %587 = vmatpush1.msra.mxu0 %v577
        %588 = vmatprep.subr.mxu0 0.0
        %589 = vmatpush1.msra.mxu0 %v576
        %590 = vmatprep.subr.mxu0 0.0
        %591 = vmatpush1.msra.mxu0 %v575
        %592 = vmatprep.subr.mxu0 0.0
        %593 = vmatpush1.msra.mxu0 %v574
        %594 = vmatprep.subr.mxu0 0.0
        %595 = vmatpush1.msra.mxu0 %v573
        %596 = vmatprep.subr.mxu0 0.0
        %597 = vmatpush1.msra.mxu0 %v572
        %598 = vmatprep.subr.mxu0 0.0
        %599 = vmatpush1.msra.mxu0 %v571
        %600 = vmatprep.subr.mxu0 0.0
        %601 = vmatpush1.msra.mxu0 %v570
        %602 = vmatprep.subr.mxu0 0.0
        %603 = vmatpush1.msra.mxu0 %v569
        %604 = vmatprep.subr.mxu0 0.0
        %605 = vmatpush1.msra.mxu0 %v568
        %606 = vmatprep.subr.mxu0 0.0
        %607 = vmatpush1.msra.mxu0 %v567
        %608 = vmatprep.subr.mxu0 0.0
        %609 = vmatpush1.msra.mxu0 %v566
        %610 = vmatprep.subr.mxu0 0.0
        %611 = vmatpush1.msra.mxu0 %v565
        %612 = vmatprep.subr.mxu0 0.0
        %613 = vmatpush1.msra.mxu0 %v564
        %614 = vmatprep.subr.mxu0 0.0
        %615 = vmatpush1.msra.mxu0 %v563
        %616 = vmatprep.subr.mxu0 0.0
        %617 = vmatpush2.msra.mxu0 0.0
        %618 = vmatprep.subr.mxu0 0.0
        %619 = vmatpush2.msra.mxu0 0.0
        %620 = vmatprep.subr.mxu0 0.0
        %621 = vmatpush2.msra.mxu0 0.0
        %622 = vmatprep.subr.mxu0 0.0
        %623 = vmatpush2.msra.mxu0 0.0
        %624 = vmatprep.subr.mxu0 0.0
        %625 = vmatpush2.msra.mxu0 0.0
        %626 = vmatprep.subr.mxu0 0.0
        %627 = vmatpush2.msra.mxu0 0.0
        %628 = vmatprep.subr.mxu0 0.0
        %629 = vmatpush2.msra.mxu0 0.0
        %630 = vmatprep.subr.mxu0 0.0
        %631 = vmatpush2.msra.mxu0 0.0
        %632 = vmatprep.subr.mxu0 0.0
        %633 = vmatpush2.msra.mxu0 0.0
        %634 = vmatprep.subr.mxu0 0.0
        %635 = vmatpush2.msra.mxu0 0.0
        %636 = vmatprep.subr.mxu0 0.0
        %637 = vmatpush2.msra.mxu0 0.0
        %638 = vmatprep.subr.mxu0 0.0
        %639 = vmatpush2.msra.mxu0 0.0
        %640 = vmatprep.subr.mxu0 0.0
        %641 = vmatpush2.msra.mxu0 0.0
        %642 = vmatprep.subr.mxu0 0.0
        %643 = vmatpush2.msra.mxu0 0.0
        %644 = vmatprep.subr.mxu0 0.0
        %645 = vmatpush2.msra.mxu0 0.0
        %646 = vmatprep.subr.mxu0 0.0
        %647 = vmatpush2.msra.mxu0 0.0
        %648 = vmatprep.mubr.f32.mxu0 0.0
        %649 = vmatmul.mubr.f32.gmra.mxu0 %v562
        %v650 = vpop.f32.mrf.mxu0
        %v651 = vadd.f32 %v583, %v650
        %v652 = vpop.f32.mrf.mxu0
        %653 = vdwg.mxu0
        %v654 = vmul.f32 %v651, 0.5
        %v655 = vmul.f32 %v651, 0.70710677
        %v656 = verf.f32.pop %v655
        %v657 = vadd.f32 %v656, 1.0
        %v658 = vmul.f32 %v654, %v657
        %659 = vadd.xlane.f32.xlu0 %v658
        %v660 = vpop.xlane.xlu0 %659
        %v661 = vmul.f32 %v660, 0.125
        %v662 = vsub.f32 %v658, %v661
        %v663 = vlaneseq
        %v664 = vshrl.u32 %v663, 7
        %v665 = vsub.s32 3, %v664
        %v666 = vrot.slane %v579, %v665
        %v667 = vmul.f32 %v662, %v666
        %v668 = vmul.f32 %v667, %v667
        %669 = vadd.xlane.f32.xlu0 %v668
        %v670 = vpop.xlane.xlu0 %669
        %v671 = vmul.f32 %v670, 0.125
        %v672 = vadd.f32 %v671, 1e-05
        %v673 = vrsqrt.pop %v672
        %v674 = vmul.f32 %v667, %v673
        %v675 = vlaneseq
        %v676 = vshrl.u32 %v675, 7
        %v677 = vsub.s32 1, %v676
        %v678 = vrot.slane %v579, %v677
        %v679 = vmul.f32 %v674, %v678
        %v680 = vlaneseq
        %v681 = vshrl.u32 %v680, 7
        %v682 = vsub.s32 2, %v681
        %v683 = vrot.slane %v579, %v682
        %v684 = vadd.f32 %v679, %v683
        %685 = vst [vmem:[%s317] sm:$0xff] %v684
        %p686 = scmp.lt.s32.totalorder %s20, 1
        %s687 = scalar_select %p686, %s20, 1
        %s688 = smul.addr %s687, 8
        %s689 = scalar_lea.vmem %s7, %s688
        // Predicated region
        $region61: #{forward.1} parent=47 // pred_check
          %p690 = pneg %p190
        $region62: #{forward.1} parent=47 // pred_check_branch
          %692 = sbr.rel (%p690) target = $region64
        $region63: #{forward.1} parent=47 // pred_region
          _
        $region64: #{forward.1} parent=47 // pred_fallthru
          _
      $region48: #{forward.1} parent=5 // pred_fallthru
        _
      %p693 = scmp.le.s32.totalorder 2, %s15
      // Predicated region
      $region65: #{forward.1} parent=5 // pred_check
        %p694 = pneg %p693
      $region66: #{forward.1} parent=5 // pred_check_branch
        %696 = sbr.rel (%p694) target = $region68
      $region67: #{forward.1} parent=5 // pred_region
        %s697 = ssub.s32 %s15, 2
        // Predicated region
        $region69: #{forward.1} parent=67 // pred_check
          %p698 = pneg %p196
        $region70: #{forward.1} parent=67 // pred_check_branch
          %700 = sbr.rel (%p698) target = $region72
        $region71: #{forward.1} parent=67 // pred_region
          %p701 = scmp.lt.s32.totalorder %s21, 1
          %s702 = scalar_select %p701, %s21, 1
          %s703 = smul.addr %s702, 8
          %s704 = scalar_lea.vmem %s7, %s703
        $region72: #{forward.1} parent=67 // pred_fallthru
          _
      $region68: #{forward.1} parent=5 // pred_fallthru
        _
    $region6: #{forward.1} parent=1 // loop_footer
      %s19 = sadd.s32 1, %s15
    $region7: #{forward.1} parent=1 // loop_footer_branch
      %14 = sbr.rel target = $region3
    $region8: #{forward.1} parent=1 // loop_exit
      _
    %705 = vsyncpa [#allocation3], 1
    %s706 = scalar_lea.sflag [#allocation3], 1
    %707 = vsyncpa %s706, 1
    %708 = vsyncpa [#allocation5], 1

</llo_original>
